<compile_context>
chip_gen: v7x
topology: tpu7x:2x2x1
jax: 0.10.0
libtpu: 0.0.40
codegen_flags: <defaults>
</compile_context>

<pallas_src>
import jax
import jax.numpy as jnp
from jax.experimental import pallas as pl
from jax.experimental.pallas import tpu as pltpu


_LANES = 128
_SUBLANES = 8
_TILE = _LANES * _SUBLANES        # 1024 elements = one (8, 128) f32 tile
_MAX_BLOCK_ROWS = 4096            # 4096 x 128 x 4B = 2 MiB per f32 input block


def _cdiv(a, b):
    return (a + b - 1) // b


def _round_up(n, m):
    return ((n + m - 1) // m) * m


def _make_kernel(eps, rows, block_rows, steps):
    """eps/rows/block_rows/steps are Python scalars -> trace-time literals."""
    groups = block_rows // _SUBLANES

    def fold(e):
        # (block_rows, 128) -> (8, 128): pure VALU sublane-group adds.
        if groups == 1:
            return e
        return e.reshape(groups, _SUBLANES, _LANES).sum(axis=0)

    def kernel(x_ref, y_ref, acc_ref):
        s = pl.program_id(0)          # shard (TensorCore on v7x)
        i = pl.program_id(1)          # block within shard

        @pl.when(i == 0)
        def _init():
            acc_ref[...] = jnp.zeros_like(acc_ref)

        start_row = (s * steps + i) * block_rows

        # Cast inside the kernel: HBM traffic stays in the native input dtype.
        d = x_ref[...].astype(jnp.float32) - y_ref[...].astype(jnp.float32)
        err = jnp.sqrt(d * d + eps)   # eps is a Python float literal

        full = start_row + block_rows <= rows

        @pl.when(full)
        def _acc_full():              # common path: unmasked accumulate
            acc_ref[...] += fold(err)

        @pl.when(jnp.logical_not(full))
        def _acc_boundary():
            # Boundary / overhang block: zero out rows beyond `rows`
            # (garbage from a partial DMA, or a clamped duplicate block).
            # jnp.where (select) is NaN-safe, unlike a multiplicative mask.
            row = jax.lax.broadcasted_iota(jnp.int32, (block_rows, _LANES), 0)
            keep = (start_row + row) < rows
            acc_ref[...] += fold(jnp.where(keep, err, 0.0))

    return kernel


def charbonnier_loss(x, y, eps=1e-6, max_block_rows=_MAX_BLOCK_ROWS):
    """mean(sqrt((x - y)^2 + eps)) via a fused Pallas streaming reduction."""
    assert x.shape == y.shape, (x.shape, y.shape)
    eps = float(eps)
    total = int(x.size)

    xf = x.reshape(-1)
    yf = y.reshape(-1)

    # 1024-aligned prefix goes through the kernel; tiny ragged tail in JAX.
    main = (total // _TILE) * _TILE
    tail = total - main

    partial_sum = jnp.float32(0.0)
    if tail:
        dt = xf[main:].astype(jnp.float32) - yf[main:].astype(jnp.float32)
        partial_sum = jnp.sum(jnp.sqrt(dt * dt + eps))

    if main:
        rows = main // _LANES                       # multiple of 8
        nb = max(1, _cdiv(rows, max_block_rows))    # target block count
        num_shards = 2 if nb >= 2 else 1            # v7x: 1 shard per TC
        nb = _round_up(nb, num_shards)
        block_rows = _round_up(_cdiv(rows, nb), _SUBLANES)   # balanced blocks
        nb = _cdiv(rows, block_rows)
        steps = _cdiv(nb, num_shards)

        x2 = xf[:main].reshape(rows, _LANES)        # native dtype, lane-dense
        y2 = yf[:main].reshape(rows, _LANES)

        kernel = _make_kernel(eps, rows, block_rows, steps)

        def in_map(s, i):
            # Clamp so redundant programs (num_shards*steps > nb) re-read the
            # last valid block instead of DMA'ing fully out of bounds; their
            # contribution is masked to zero inside the kernel.
            return (jnp.minimum(s * steps + i, nb - 1), 0)

        bytes_accessed = (main * (x2.dtype.itemsize + y2.dtype.itemsize)
                          + num_shards * _SUBLANES * _LANES * 4)

        acc = pl.pallas_call(
            kernel,
            out_shape=jax.ShapeDtypeStruct(
                (num_shards, _SUBLANES, _LANES), jnp.float32),
            grid=(num_shards, steps),
            in_specs=[
                pl.BlockSpec((block_rows, _LANES), in_map),
                pl.BlockSpec((block_rows, _LANES), in_map),
            ],
            # Per-shard (8,128) resident accumulator (constant block across i).
            out_specs=pl.BlockSpec((None, _SUBLANES, _LANES),
                                   lambda s, i: (s, 0, 0)),
            compiler_params=pltpu.CompilerParams(
                dimension_semantics=("parallel", "arbitrary")),
            cost_estimate=pl.CostEstimate(
                flops=4 * main, transcendentals=main,
                bytes_accessed=bytes_accessed),
        )(x2, y2)

        partial_sum = partial_sum + jnp.sum(acc)

    return partial_sum / jnp.float32(total)


class L1CharbonnierLoss:
    """L1 Charbonnier loss (forward only, no learnable parameters)."""

    def __init__(self, eps=1e-6):
        self.eps = eps

    def __call__(self, X, Y):
        return charbonnier_loss(X, Y, self.eps)


def _reference(x, y, eps=1e-6):
    d = x.astype(jnp.float32) - y.astype(jnp.float32)
    return jnp.mean(jnp.sqrt(d * d + eps))


if __name__ == "__main__":
    key = jax.random.PRNGKey(0)
    k1, k2, k3, k4, k5, k6 = jax.random.split(key, 6)

    loss_mod = L1CharbonnierLoss(eps=1e-6)
    loss_fn = jax.jit(lambda a, b: loss_mod(a, b))

    # 1) Aligned (N, C, H, W) = (2, 4, 16, 16): 2048 elems, no padding path.
    X = jax.random.normal(k1, (2, 4, 16, 16), jnp.float32)
    Y = jax.random.normal(k2, (2, 4, 16, 16), jnp.float32)
    out = jax.block_until_ready(loss_fn(X, Y))
    ref = jax.block_until_ready(_reference(X, Y, 1e-6))
    assert jnp.allclose(out, ref, rtol=1e-4, atol=1e-6), (float(out), float(ref))

    # 2) Ragged shape exercising the plain-JAX tail path (no full-array pad).
    Xr = jax.random.normal(k3, (3, 5, 7, 11), jnp.float32)
    Yr = jax.random.normal(k4, (3, 5, 7, 11), jnp.float32)
    out_r = jax.block_until_ready(loss_fn(Xr, Yr))
    ref_r = jax.block_until_ready(_reference(Xr, Yr, 1e-6))
    assert jnp.allclose(out_r, ref_r, rtol=1e-4, atol=1e-6), (float(out_r), float(ref_r))

    # 3) bf16 inputs streamed natively (cast to f32 inside the kernel).
    Xb = jax.random.normal(k5, (2, 4, 16, 16), jnp.bfloat16)
    Yb = jax.random.normal(k6, (2, 4, 16, 16), jnp.bfloat16)
    out_b = jax.block_until_ready(loss_fn(Xb, Yb))
    ref_b = jax.block_until_ready(_reference(Xb, Yb, 1e-6))
    assert jnp.allclose(out_b, ref_b, rtol=1e-4, atol=1e-5), (float(out_b), float(ref_b))

    # 4) Small max_block_rows to exercise the multi-block / 2-shard grid,
    #    the clamped-duplicate program and the masked boundary block.
    Xs = jax.random.normal(k1, (3, 1025), jnp.float32)
    Ys = jax.random.normal(k2, (3, 1025), jnp.float32)
    ref_s = jax.block_until_ready(_reference(Xs, Ys, 1e-6))
    out_s8 = jax.block_until_ready(charbonnier_loss(Xs, Ys, 1e-6, max_block_rows=8))
    assert jnp.allclose(out_s8, ref_s, rtol=1e-4, atol=1e-6), (float(out_s8), float(ref_s))
    out_s16 = jax.block_until_ready(charbonnier_loss(Xs, Ys, 1e-6, max_block_rows=16))
    assert jnp.allclose(out_s16, ref_s, rtol=1e-4, atol=1e-6), (float(out_s16), float(ref_s))

    print("KERNEL_OK")
</pallas_src>

<mosaic_0001>
module attributes {stable_mosaic.version = 11 : i64} {
  func.func @kernel(%arg0: i32, %arg1: i32, %arg2: memref<16x128xf32, #tpu.memory_space<vmem>>, %arg3: memref<16x128xf32, #tpu.memory_space<vmem>>, %arg4: memref<1x8x128xf32, #tpu.memory_space<vmem>>) attributes {dimension_semantics = [#tpu.dimension_semantics<parallel>, #tpu.dimension_semantics<arbitrary>], iteration_bounds = array<i64: 1, 1>, scalar_prefetch = 0 : i64, scratch_operands = 0 : i64, tpu.core_type = #tpu.core_type<tc>, window_params = [{transform_indices = @transform_0, window_bounds = array<i64: 16, 128>}, {transform_indices = @transform_1, window_bounds = array<i64: 16, 128>}, {transform_indices = @transform_2, window_bounds = array<i64: 1, 8, 128>}]} {
    %c0_i32 = arith.constant 0 : i32
    %0 = arith.cmpi eq, %arg1, %c0_i32 : i32
    %1 = arith.extui %0 : i1 to i32
    %c0_i32_0 = arith.constant 0 : i32
    %2 = arith.cmpi ne, %1, %c0_i32_0 : i32
    scf.if %2 {
      %cst_8 = arith.constant 0.000000e+00 : f32
      %20 = vector.broadcast %cst_8 : f32 to vector<8x128xf32>
      %c0_9 = arith.constant 0 : index
      %c0_10 = arith.constant 0 : index
      %c0_11 = arith.constant 0 : index
      %21 = vector.load %arg4[%c0_9, %c0_10, %c0_11] : memref<1x8x128xf32, #tpu.memory_space<vmem>>, vector<1x8x128xf32>
      %22 = vector.shape_cast %21 : vector<1x8x128xf32> to vector<8x128xf32>
      %23 = vector.shape_cast %20 : vector<8x128xf32> to vector<1x8x128xf32>
      tpu.vector_store %arg4[%c0_9, %c0_10, %c0_11], %23 {strides = array<i32>} : memref<1x8x128xf32, #tpu.memory_space<vmem>>, vector<1x8x128xf32>,
    } else {
    }
    %c1_i32 = arith.constant 1 : i32
    %3 = arith.muli %arg0, %c1_i32 : i32
    %4 = arith.addi %3, %arg1 : i32
    %c16_i32 = arith.constant 16 : i32
    %5 = arith.muli %4, %c16_i32 : i32
    %c0 = arith.constant 0 : index
    %c0_1 = arith.constant 0 : index
    %6 = vector.load %arg2[%c0, %c0_1] : memref<16x128xf32, #tpu.memory_space<vmem>>, vector<16x128xf32>
    %c0_2 = arith.constant 0 : index
    %c0_3 = arith.constant 0 : index
    %7 = vector.load %arg3[%c0_2, %c0_3] : memref<16x128xf32, #tpu.memory_space<vmem>>, vector<16x128xf32>
    %8 = arith.subf %6, %7 : vector<16x128xf32>
    %9 = arith.mulf %8, %8 : vector<16x128xf32>
    %cst = arith.constant 9.99999997E-7 : f32
    %10 = vector.broadcast %cst : f32 to vector<16x128xf32>
    %11 = arith.addf %9, %10 : vector<16x128xf32>
    %12 = math.sqrt %11 : vector<16x128xf32>
    %c16_i32_4 = arith.constant 16 : i32
    %13 = arith.addi %5, %c16_i32_4 : i32
    %c16_i32_5 = arith.constant 16 : i32
    %14 = arith.cmpi sle, %13, %c16_i32_5 : i32
    %15 = arith.extui %14 : i1 to i32
    %c0_i32_6 = arith.constant 0 : i32
    %16 = arith.cmpi ne, %15, %c0_i32_6 : i32
    scf.if %16 {
      %c0_8 = arith.constant 0 : index
      %c0_9 = arith.constant 0 : index
      %c0_10 = arith.constant 0 : index
      %20 = vector.load %arg4[%c0_8, %c0_9, %c0_10] : memref<1x8x128xf32, #tpu.memory_space<vmem>>, vector<1x8x128xf32>
      %21 = vector.shape_cast %20 : vector<1x8x128xf32> to vector<8x128xf32>
      %22 = vector.shape_cast %12 : vector<16x128xf32> to vector<2x8x128xf32>
      %cst_11 = arith.constant dense<0.000000e+00> : vector<8x128xf32>
      %23 = vector.multi_reduction <add>, %22, %cst_11 [0] : vector<2x8x128xf32> to vector<8x128xf32>
      %24 = arith.addf %21, %23 : vector<8x128xf32>
      %c0_12 = arith.constant 0 : index
      %c0_13 = arith.constant 0 : index
      %c0_14 = arith.constant 0 : index
      %25 = vector.load %arg4[%c0_12, %c0_13, %c0_14] : memref<1x8x128xf32, #tpu.memory_space<vmem>>, vector<1x8x128xf32>
      %26 = vector.shape_cast %25 : vector<1x8x128xf32> to vector<8x128xf32>
      %27 = vector.shape_cast %24 : vector<8x128xf32> to vector<1x8x128xf32>
      tpu.vector_store %arg4[%c0_12, %c0_13, %c0_14], %27 {strides = array<i32>} : memref<1x8x128xf32, #tpu.memory_space<vmem>>, vector<1x8x128xf32>,
    } else {
    }
    %true = arith.constant true
    %17 = arith.xori %14, %true : i1
    %18 = arith.extui %17 : i1 to i32
    %c0_i32_7 = arith.constant 0 : i32
    %19 = arith.cmpi ne, %18, %c0_i32_7 : i32
    scf.if %19 {
      %20 = tpu.iota {dimensions = array<i32: 0>} : vector<16x128xi32>
      %21 = vector.broadcast %5 : i32 to vector<16x128xi32>
      %22 = arith.addi %21, %20 : vector<16x128xi32>
      %c16_i32_8 = arith.constant 16 : i32
      %23 = vector.broadcast %c16_i32_8 : i32 to vector<16x128xi32>
      %24 = arith.cmpi slt, %22, %23 : vector<16x128xi32>
      %c0_9 = arith.constant 0 : index
      %c0_10 = arith.constant 0 : index
      %c0_11 = arith.constant 0 : index
      %25 = vector.load %arg4[%c0_9, %c0_10, %c0_11] : memref<1x8x128xf32, #tpu.memory_space<vmem>>, vector<1x8x128xf32>
      %26 = vector.shape_cast %25 : vector<1x8x128xf32> to vector<8x128xf32>
      %cst_12 = arith.constant 0.000000e+00 : f32
      %27 = vector.broadcast %cst_12 : f32 to vector<16x128xf32>
      %28 = arith.select %24, %12, %27 : vector<16x128xi1>, vector<16x128xf32>
      %29 = vector.shape_cast %28 : vector<16x128xf32> to vector<2x8x128xf32>
      %cst_13 = arith.constant dense<0.000000e+00> : vector<8x128xf32>
      %30 = vector.multi_reduction <add>, %29, %cst_13 [0] : vector<2x8x128xf32> to vector<8x128xf32>
      %31 = arith.addf %26, %30 : vector<8x128xf32>
      %c0_14 = arith.constant 0 : index
      %c0_15 = arith.constant 0 : index
      %c0_16 = arith.constant 0 : index
      %32 = vector.load %arg4[%c0_14, %c0_15, %c0_16] : memref<1x8x128xf32, #tpu.memory_space<vmem>>, vector<1x8x128xf32>
      %33 = vector.shape_cast %32 : vector<1x8x128xf32> to vector<8x128xf32>
      %34 = vector.shape_cast %31 : vector<8x128xf32> to vector<1x8x128xf32>
      tpu.vector_store %arg4[%c0_14, %c0_15, %c0_16], %34 {strides = array<i32>} : memref<1x8x128xf32, #tpu.memory_space<vmem>>, vector<1x8x128xf32>,
    } else {
    }
    return
  }
  func.func @transform_0(%arg0: i32, %arg1: i32) -> (i32, i32) {
    %c1_i32 = arith.constant 1 : i32
    %0 = arith.muli %arg0, %c1_i32 : i32
    %1 = arith.addi %0, %arg1 : i32
    %c0_i32 = arith.constant 0 : i32
    %2 = arith.minsi %1, %c0_i32 : i32
    %c0_i32_0 = arith.constant 0 : i32
    %c0_i32_1 = arith.constant 0 : i32
    return %2, %c0_i32_0 : i32, i32
  }
  func.func @transform_1(%arg0: i32, %arg1: i32) -> (i32, i32) {
    %c1_i32 = arith.constant 1 : i32
    %0 = arith.muli %arg0, %c1_i32 : i32
    %1 = arith.addi %0, %arg1 : i32
    %c0_i32 = arith.constant 0 : i32
    %2 = arith.minsi %1, %c0_i32 : i32
    %c0_i32_0 = arith.constant 0 : i32
    %c0_i32_1 = arith.constant 0 : i32
    return %2, %c0_i32_0 : i32, i32
  }
  func.func @transform_2(%arg0: i32, %arg1: i32) -> (i32, i32, i32) {
    %c0_i32 = arith.constant 0 : i32
    %c0_i32_0 = arith.constant 0 : i32
    %c0_i32_1 = arith.constant 0 : i32
    return %arg0, %c0_i32, %c0_i32_0 : i32, i32, i32
  }
}

</mosaic_0001>

<llo_original>
// kernel: _lambda_.1
$region0: #{_lambda_.1}
  #allocation0 [shape = 'u32[]', space=smem, size = 0x4, offset = 0x4, fixed_abs, tag = 'smem constant byte address 0x4 - core index']
  #allocation1 [shape = 'u32[144,128]{1,0:T(1,128)}', space=vmem, size = 0x12000, scoped, tag = 'internal scratch']
  %s0 = inlined_call_operand.vmem [shape: f32[16,128], index: 0, kind: input, shape index: {}]
  %s1 = inlined_call_operand.vmem [shape: f32[16,128], index: 1, kind: input, shape index: {}]
  %s2 = inlined_call_operand.vmem [shape: f32[1,8,128], index: 2, kind: output, shape index: {}]
  %s3 = sld [smem:[#allocation0]]
  $region30: #{_lambda_.1} parent=0
    _
  %s5 = ssub.s32 1, %s3
  %s6 = scalar_select 0, %s5, %s3
  // Predicated region
  $region2: #{_lambda_.1} parent=0 // pred_check
    _
  $region3: #{_lambda_.1} parent=0 // pred_check_branch
    %8 = sbr.rel (0) target = $region5
  $region4: #{_lambda_.1} parent=0 // pred_region
    %s9 = sadd.s32 0, 0
    %p10 = scmp.lt.s32.totalorder %s9, 0
    %s11 = scalar_select %p10, %s9, 0
    %s12 = smul.u32 2, %s11
    %p13 = scmp.lt.s32.totalorder %s12, 1
    %s14 = scalar_select %p13, %s12, 1
    %s15 = smul.addr %s14, 8
    %s16 = scalar_lea.vmem %s0, %s15
    %s17 = sadd.s32 0, 0
    %p18 = scmp.lt.s32.totalorder %s17, 0
    %s19 = scalar_select %p18, %s17, 0
    %s20 = smul.u32 2, %s19
  $region5: #{_lambda_.1} parent=0 // pred_fallthru
    _
  // Predicated region
  $region6: #{_lambda_.1} parent=0 // pred_check
    _
  $region7: #{_lambda_.1} parent=0 // pred_check_branch
    %22 = sbr.rel (0) target = $region9
  $region8: #{_lambda_.1} parent=0 // pred_region
    %s23 = sadd.s32 0, 0
    %p24 = scmp.lt.s32.totalorder %s23, 0
    %s25 = scalar_select %p24, %s23, 0
    %s26 = smul.u32 2, %s25
    %p27 = scmp.lt.s32.totalorder %s26, 1
    %s28 = scalar_select %p27, %s26, 1
    %s29 = smul.addr %s28, 8
    %s30 = scalar_lea.vmem %s1, %s29
    %s31 = sadd.s32 0, 0
    %p32 = scmp.lt.s32.totalorder %s31, 0
    %s33 = scalar_select %p32, %s31, 0
    %s34 = smul.u32 2, %s33
  $region9: #{_lambda_.1} parent=0 // pred_fallthru
    _
  %s35 = sadd.s32 0, 0
  %p36 = scmp.lt.s32.totalorder %s35, 0
  %s37 = scalar_select %p36, %s35, 0
  %s38 = smul.u32 2, %s37
  %p39 = scmp.lt.s32.totalorder %s38, 1
  %s40 = scalar_select %p39, %s38, 1
  %s41 = smul.addr %s40, 8
  %s42 = scalar_lea.vmem %s0, %s41
  %s43 = sadd.s32 0, 0
  %p44 = scmp.lt.s32.totalorder %s43, 0
  %s45 = scalar_select %p44, %s43, 0
  %s46 = smul.u32 2, %s45
  %p47 = scmp.lt.s32.totalorder %s46, 1
  %s48 = scalar_select %p47, %s46, 1
  %s49 = smul.addr %s48, 8
  %s50 = scalar_lea.vmem %s1, %s49
  %s51 = sadd.s32 0, 0
  %p52 = scmp.lt.s32.totalorder %s51, 0
  %s53 = scalar_select %p52, %s51, 0
  %s54 = smul.u32 2, %s53
  %p55 = scmp.lt.s32.totalorder %s54, 1
  %s56 = scalar_select %p55, %s54, 1
  %s57 = smul.addr %s56, 8
  %s58 = scalar_lea.vmem %s0, %s57
  %s59 = sadd.s32 0, 0
  %p60 = scmp.lt.s32.totalorder %s59, 0
  %s61 = scalar_select %p60, %s59, 0
  %s62 = smul.u32 2, %s61
  %s63 = sadd.s32 0, 0
  %p64 = scmp.lt.s32.totalorder %s63, 0
  %s65 = scalar_select %p64, %s63, 0
  %s66 = smul.u32 2, %s65
  %p67 = scmp.lt.s32.totalorder %s66, 1
  %s68 = scalar_select %p67, %s66, 1
  %s69 = smul.addr %s68, 8
  %s70 = scalar_lea.vmem %s1, %s69
  %s71 = sadd.s32 0, 0
  %p72 = scmp.lt.s32.totalorder %s71, 0
  %s73 = scalar_select %p72, %s71, 0
  %s74 = smul.u32 2, %s73
  %p75 = scmp.eq.s32.totalorder 0, 0
  // Predicated region
  $region10: #{_lambda_.1} parent=0 // pred_check
    %p76 = pneg %p75
  $region11: #{_lambda_.1} parent=0 // pred_check_branch
    %78 = sbr.rel (%p76) target = $region13
  $region12: #{_lambda_.1} parent=0 // pred_region
    %79 = vst [vmem:[%s2] sm:$0xff] 0.0
  $region13: #{_lambda_.1} parent=0 // pred_fallthru
    _
  %s80 = sadd.s32 0, 0
  %s81 = smul.u32 %s80, 16
  %v82 = vld [vmem:[%s58] sm:$0xff]
  %v83 = vld [vmem:[%s58 + $0x8] sm:$0xff]
  %v84 = vld [vmem:[%s70] sm:$0xff]
  %v85 = vld [vmem:[%s70 + $0x8] sm:$0xff]
  %v86 = vsub.f32 %v82, %v84
  %v87 = vsub.f32 %v83, %v85
  %v88 = vmul.f32 %v86, %v86
  %v89 = vmul.f32 %v87, %v87
  %v90 = vadd.f32 %v88, 1e-06
  %v91 = vadd.f32 %v89, 1e-06
  %v92 = vrsqrt.pop %v90
  %v93 = vmul.f32 %v90, %v92
  %vm94 = vcmp.eq.f32.partialorder %v90, inf
  %v95 = vsel %vm94, %v90, %v93
  %vm96 = vcmp.eq.f32.partialorder %v90, 0.0
  %v97 = vand.u32 %v90, 2147483648
  %v98 = vsel %vm96, %v97, %v95
  %v99 = vrsqrt.pop %v91
  %v100 = vmul.f32 %v91, %v99
  %vm101 = vcmp.eq.f32.partialorder %v91, inf
  %v102 = vsel %vm101, %v91, %v100
  %vm103 = vcmp.eq.f32.partialorder %v91, 0.0
  %v104 = vand.u32 %v91, 2147483648
  %v105 = vsel %vm103, %v104, %v102
  %s106 = sadd.s32 %s81, 16
  %p107 = scmp.le.s32.totalorder %s106, 16
  // Predicated region
  $region14: #{_lambda_.1} parent=0 // pred_check
    %p108 = pneg %p107
  $region15: #{_lambda_.1} parent=0 // pred_check_branch
    %110 = sbr.rel (%p108) target = $region17
  $region16: #{_lambda_.1} parent=0 // pred_region
    %v111 = vld [vmem:[%s2] sm:$0xff]
    %v112 = vadd.f32 %v98, %v105
    %v113 = vadd.f32 %v111, %v112
    %114 = vst [vmem:[%s2] sm:$0xff] %v113
  $region17: #{_lambda_.1} parent=0 // pred_fallthru
    _
  %p115 = scmp.gt.s32.totalorder %s106, 16
  // Predicated region
  $region18: #{_lambda_.1} parent=0 // pred_check
    %p116 = pneg %p115
  $region19: #{_lambda_.1} parent=0 // pred_check_branch
    %118 = sbr.rel (%p116) target = $region21
  $region20: #{_lambda_.1} parent=0 // pred_region
    %v119 = vlaneseq
    %v120 = vshrl.u32 %v119, 7
    %v121 = vadd.s32 %v120, 8
    %v122 = vstv %s81
    %v123 = vadd.s32 %v122, %v120
    %v124 = vadd.s32 %v122, %v121
    %vm125 = vcmp.lt.s32.totalorder %v123, 16
    %vm126 = vcmp.lt.s32.totalorder %v124, 16
    %v127 = vld [vmem:[%s2] sm:$0xff]
    %v128 = vsel %vm125, %v98, 0.0
    %v129 = vsel %vm126, %v105, 0.0
    %v130 = vadd.f32 %v128, %v129
    %v131 = vadd.f32 %v127, %v130
    %132 = vst [vmem:[%s2] sm:$0xff] %v131
  $region21: #{_lambda_.1} parent=0 // pred_fallthru
    _
  // Predicated region
  $region22: #{_lambda_.1} parent=0 // pred_check
    _
  $region23: #{_lambda_.1} parent=0 // pred_check_branch
    %134 = sbr.rel (0) target = $region25
  $region24: #{_lambda_.1} parent=0 // pred_region
    _
  $region25: #{_lambda_.1} parent=0 // pred_fallthru
    _
  // Predicated region
  $region26: #{_lambda_.1} parent=0 // pred_check
    _
  $region27: #{_lambda_.1} parent=0 // pred_check_branch
    %136 = sbr.rel (0) target = $region29
  $region28: #{_lambda_.1} parent=0 // pred_region
    _
  $region29: #{_lambda_.1} parent=0 // pred_fallthru
    _

</llo_original>
